<compile_context>
chip_gen: v7x
topology: tpu7x:2x2x1
jax: 0.10.0
libtpu: 0.0.40
codegen_flags: <defaults>
</compile_context>

<pallas_src>
import functools

import numpy as np

import jax
import jax.numpy as jnp
from jax.experimental import pallas as pl
from jax.experimental.pallas import tpu as pltpu


def _translator_kernel(masks_ref, x_ref, w0_ref, b0_ref, w1_ref, b1_ref,
                       w2_ref, b2_ref, o_ref, *, H, W):
    """Fused 3x(conv3x3 + bias + LeakyReLU(0.1)) on one batch-tile.

    masks_ref: (9, 1, L) f32 per-tap validity masks (implements zero padding;
               also zeroes reads that cross packed-image boundaries)
    x_ref    : (Cin, L)  input, channels on sublanes, batch*spatial on lanes
    w*_ref   : (Cout, 9*Cin) tap-major flattened conv weights
    b*_ref   : (Cout, 1) biases
    o_ref    : (Cout, L) output
    where L = B_tile * H * W.
    """
    L = x_ref.shape[-1]

    def conv3x3_lrelu(act, w_ref, b_ref):
        # Tap t = (sy+1)*3 + (sx+1) reads input pixel (y+sy, x+sx); in the
        # flat lane index that is a circular shift by k = sy*W + sx.  Wrapped
        # / row-crossing / image-crossing positions are exactly the
        # out-of-image reads and are zeroed by masks_ref[t].
        taps = []
        for t in range(9):
            sy, sx = t // 3 - 1, t % 3 - 1
            k = sy * W + sx
            if k == 0:
                taps.append(act)                       # centre tap: no shift
            else:
                shifted = pltpu.roll(act, shift=(-k) % L, axis=1)
                taps.append(shifted * masks_ref[t])    # (1,L) mask broadcast
        stacked = jnp.concatenate(taps, axis=0)        # (9*Cin, L), tap-major
        # One MXU matmul per conv: K = 9*Cin, N = L.
        acc = jnp.dot(w_ref[...], stacked,
                      preferred_element_type=jnp.float32)   # (Cout, L)
        acc = acc + b_ref[...]                               # (Cout,1) bcast
        return jnp.where(acc >= 0, acc, 0.1 * acc)           # LeakyReLU(0.1)

    act = x_ref[...].astype(jnp.float32)
    act = conv3x3_lrelu(act, w0_ref, b0_ref)
    act = conv3x3_lrelu(act, w1_ref, b1_ref)
    act = conv3x3_lrelu(act, w2_ref, b2_ref)
    o_ref[...] = act.astype(o_ref.dtype)


def _make_shift_masks(H, W, b_tile):
    """masks[t, 0, b*H*W + y*W + x] == 1 iff (y+sy, x+sx) is inside the image,
    where t = (sy+1)*3 + (sx+1). Tiled over the b_tile images packed on lanes."""
    yy, xx = np.mgrid[0:H, 0:W]
    masks = np.zeros((9, 1, H * W), dtype=np.float32)
    for t in range(9):
        sy, sx = t // 3 - 1, t % 3 - 1
        valid = ((yy + sy >= 0) & (yy + sy < H) &
                 (xx + sx >= 0) & (xx + sx < W))
        masks[t, 0, :] = valid.reshape(-1).astype(np.float32)
    return jnp.asarray(np.tile(masks, (1, 1, b_tile)))


def _choose_batch_tile(N, HW):
    """Pick B_tile | N so the lane slab B_tile*HW is a multiple of 128 while
    keeping >= 2 grid steps when possible (v7x has 2 TensorCores)."""
    divisors = [b for b in range(1, N + 1) if N % b == 0]
    lane_ok = [b for b in divisors if (b * HW) % 128 == 0]
    cands = lane_ok or divisors
    multi = [b for b in cands if N // b >= 2]
    return max(multi) if multi else min(cands)


def _vmem_limit_bytes(max_c, L, resident_elems):
    f32 = 4
    streamed = 2 * 2 * max_c * L * f32          # double-buffered x / out blocks
    temps = (9 + 3) * max_c * L * f32           # tap-stacked operand + act/acc
    est = 2 * resident_elems * f32 + streamed + 2 * temps + (2 << 20)
    # Explicit scoped-VMEM budget; capped at v7x's 64 MiB physical per TC.
    return int(min(64 << 20, max(32 << 20, est)))


@jax.jit
def translator_forward(x_nchw, w0, b0, w1, b1, w2, b2):
    """x_nchw: (N, Cin, H, W); w*: (Cout, 9*Cin) tap-major flat; b*: (Cout, 1)."""
    N, cin, H, W = x_nchw.shape
    mid = w1.shape[0]
    planes = w2.shape[0]
    HW = H * W
    assert H >= 2 and W >= 2, "flat-shift trick needs H >= 2 and W >= 2"

    b_tile = _choose_batch_tile(N, HW)
    grid = N // b_tile
    L = b_tile * HW
    masks = _make_shift_masks(H, W, b_tile)

    # (N,C,H,W) -> (C, N*H*W): batch packed onto the lane axis
    # (one cheap XLA transpose outside the kernel).
    x_flat = jnp.transpose(x_nchw, (1, 0, 2, 3)).reshape(cin, N * HW)

    resident_elems = (masks.size + w0.size + b0.size + w1.size + b1.size
                      + w2.size + b2.size)
    kernel = functools.partial(_translator_kernel, H=H, W=W)

    out_flat = pl.pallas_call(
        kernel,
        out_shape=jax.ShapeDtypeStruct((planes, N * HW), x_nchw.dtype),
        grid_spec=pltpu.PrefetchScalarGridSpec(
            num_scalar_prefetch=0,
            grid=(grid,),                                    # parallel batch tiles
            in_specs=[
                pl.BlockSpec((9, 1, L), lambda n: (0, 0, 0)),  # masks (resident)
                pl.BlockSpec((cin, L), lambda n: (0, n)),      # x (streamed)
                pl.BlockSpec(w0.shape, lambda n: (0, 0)),      # w0 (resident)
                pl.BlockSpec(b0.shape, lambda n: (0, 0)),      # b0
                pl.BlockSpec(w1.shape, lambda n: (0, 0)),      # w1
                pl.BlockSpec(b1.shape, lambda n: (0, 0)),      # b1
                pl.BlockSpec(w2.shape, lambda n: (0, 0)),      # w2
                pl.BlockSpec(b2.shape, lambda n: (0, 0)),      # b2
            ],
            out_specs=pl.BlockSpec((planes, L), lambda n: (0, n)),
        ),
        compiler_params=pltpu.CompilerParams(
            dimension_semantics=("parallel",),
            vmem_limit_bytes=_vmem_limit_bytes(max(cin, mid, planes), L,
                                               int(resident_elems))),
        # TODO(synk): for very large channel counts (e.g. Cin=planes=512 on
        # v7x's 64 MiB VMEM) additionally single-buffer the constant-index
        # weight specs (pipeline_mode=pl.Buffered(1)), consider bf16 weights,
        # and/or add a Cout-tile ("arbitrary") grid axis; not needed here.
    )(masks, x_flat, w0, b0, w1, b1, w2, b2)

    # (planes, N*H*W) -> (N, planes, H, W)
    return jnp.transpose(out_flat.reshape(planes, N, H, W), (1, 0, 2, 3))


def make_translator_params(key, in_planes, planes, dtype=jnp.float32):
    """Deterministic synthetic params. PyTorch conv weight is (Cout,Cin,3,3);
    the kernel consumes tap-major flattened (Cout, 9*Cin) and bias (Cout, 1)."""
    def conv_params(k, cin, cout):
        kw, kb = jax.random.split(k)
        bound = 1.0 / ((cin * 9) ** 0.5)
        w_oihw = jax.random.uniform(kw, (cout, cin, 3, 3), dtype,
                                    minval=-bound, maxval=bound)
        b = jax.random.uniform(kb, (cout,), dtype, minval=-bound, maxval=bound)
        # (Cout,Cin,ky,kx) -> (Cout,ky,kx,Cin) -> (Cout, 9*Cin); column index
        # (ky*3+kx)*Cin + c matches the tap-major stacking in the kernel.
        w_flat = jnp.transpose(w_oihw, (0, 2, 3, 1)).reshape(cout, 9 * cin)
        return dict(w=w_flat, b=b.reshape(cout, 1), w_oihw=w_oihw, b_vec=b)

    k0, k1, k2 = jax.random.split(key, 3)
    return dict(c0=conv_params(k0, in_planes, in_planes),
                c1=conv_params(k1, in_planes, planes),
                c2=conv_params(k2, planes, planes))


def _reference_forward(x_nchw, params):
    """Pure-JAX reference (lax.conv, NCHW) to sanity-check the kernel."""
    def conv(x, w_oihw, b):
        y = jax.lax.conv_general_dilated(
            x, w_oihw, window_strides=(1, 1), padding=((1, 1), (1, 1)),
            dimension_numbers=("NCHW", "OIHW", "NCHW"),
            precision=jax.lax.Precision.HIGHEST)
        y = y + b[None, :, None, None]
        return jnp.where(y >= 0, y, 0.1 * y)

    out = conv(x_nchw, params["c0"]["w_oihw"], params["c0"]["b_vec"])
    out = conv(out, params["c1"]["w_oihw"], params["c1"]["b_vec"])
    out = conv(out, params["c2"]["w_oihw"], params["c2"]["b_vec"])
    return out


if __name__ == "__main__":
    key = jax.random.PRNGKey(0)
    kx, kp = jax.random.split(key)

    N, Cin, planes, H, W = 2, 4, 8, 16, 16
    x = jax.random.normal(kx, (N, Cin, H, W), dtype=jnp.float32)
    params = make_translator_params(kp, Cin, planes)

    out = translator_forward(
        x,
        params["c0"]["w"], params["c0"]["b"],
        params["c1"]["w"], params["c1"]["b"],
        params["c2"]["w"], params["c2"]["b"])
    out = jax.block_until_ready(out)

    ref = jax.block_until_ready(_reference_forward(x, params))
    assert out.shape == (N, planes, H, W), out.shape
    max_err = float(jnp.max(jnp.abs(out - ref)))
    # Tolerance covers possible bf16-decomposed MXU passes for f32 matmuls;
    # structural bugs produce errors orders of magnitude larger.
    assert jnp.allclose(out, ref, atol=1e-2, rtol=1e-2), max_err

    print("KERNEL_OK")
</pallas_src>

<mosaic_0001>
module attributes {stable_mosaic.version = 11 : i64} {
  func.func @_translator_kernel(%arg0: i32, %arg1: memref<9x1x256xf32, #tpu.memory_space<vmem>>, %arg2: memref<4x256xf32, #tpu.memory_space<vmem>>, %arg3: memref<4x36xf32, #tpu.memory_space<vmem>>, %arg4: memref<4x1xf32, #tpu.memory_space<vmem>>, %arg5: memref<8x36xf32, #tpu.memory_space<vmem>>, %arg6: memref<8x1xf32, #tpu.memory_space<vmem>>, %arg7: memref<8x72xf32, #tpu.memory_space<vmem>>, %arg8: memref<8x1xf32, #tpu.memory_space<vmem>>, %arg9: memref<8x256xf32, #tpu.memory_space<vmem>>) attributes {dimension_semantics = [#tpu.dimension_semantics<parallel>], iteration_bounds = array<i64: 2>, scalar_prefetch = 0 : i64, scratch_operands = 0 : i64, tpu.core_type = #tpu.core_type<tc>, window_params = [{pipeline_mode = #tpu.pipeline_mode<synchronous>, transform_indices = @transform_0, window_bounds = array<i64: 9, 1, 256>}, {transform_indices = @transform_1, window_bounds = array<i64: 4, 256>}, {pipeline_mode = #tpu.pipeline_mode<synchronous>, transform_indices = @transform_2, window_bounds = array<i64: 4, 36>}, {pipeline_mode = #tpu.pipeline_mode<synchronous>, transform_indices = @transform_3, window_bounds = array<i64: 4, 1>}, {pipeline_mode = #tpu.pipeline_mode<synchronous>, transform_indices = @transform_4, window_bounds = array<i64: 8, 36>}, {pipeline_mode = #tpu.pipeline_mode<synchronous>, transform_indices = @transform_5, window_bounds = array<i64: 8, 1>}, {pipeline_mode = #tpu.pipeline_mode<synchronous>, transform_indices = @transform_6, window_bounds = array<i64: 8, 72>}, {pipeline_mode = #tpu.pipeline_mode<synchronous>, transform_indices = @transform_7, window_bounds = array<i64: 8, 1>}, {transform_indices = @transform_8, window_bounds = array<i64: 8, 256>}]} {
    %c0 = arith.constant 0 : index
    %c0_0 = arith.constant 0 : index
    %0 = vector.load %arg2[%c0, %c0_0] : memref<4x256xf32, #tpu.memory_space<vmem>>, vector<4x256xf32>
    %c17_i32 = arith.constant 17 : i32
    %1 = tpu.dynamic_rotate %0 by %c17_i32 dim 1 : vector<4x256xf32>, i32 -> vector<4x256xf32>
    %c0_1 = arith.constant 0 : index
    %c0_2 = arith.constant 0 : index
    %c0_3 = arith.constant 0 : index
    %2 = vector.load %arg1[%c0_1, %c0_2, %c0_3] : memref<9x1x256xf32, #tpu.memory_space<vmem>>, vector<1x1x256xf32>
    %3 = vector.shape_cast %2 : vector<1x1x256xf32> to vector<1x256xf32>
    %4 = vector.broadcast %3 : vector<1x256xf32> to vector<4x256xf32>
    %5 = arith.mulf %1, %4 : vector<4x256xf32>
    %c16_i32 = arith.constant 16 : i32
    %6 = tpu.dynamic_rotate %0 by %c16_i32 dim 1 : vector<4x256xf32>, i32 -> vector<4x256xf32>
    %c1 = arith.constant 1 : index
    %c0_4 = arith.constant 0 : index
    %c0_5 = arith.constant 0 : index
    %7 = vector.load %arg1[%c1, %c0_4, %c0_5] : memref<9x1x256xf32, #tpu.memory_space<vmem>>, vector<1x1x256xf32>
    %8 = vector.shape_cast %7 : vector<1x1x256xf32> to vector<1x256xf32>
    %9 = vector.broadcast %8 : vector<1x256xf32> to vector<4x256xf32>
    %10 = arith.mulf %6, %9 : vector<4x256xf32>
    %c15_i32 = arith.constant 15 : i32
    %11 = tpu.dynamic_rotate %0 by %c15_i32 dim 1 : vector<4x256xf32>, i32 -> vector<4x256xf32>
    %c2 = arith.constant 2 : index
    %c0_6 = arith.constant 0 : index
    %c0_7 = arith.constant 0 : index
    %12 = vector.load %arg1[%c2, %c0_6, %c0_7] : memref<9x1x256xf32, #tpu.memory_space<vmem>>, vector<1x1x256xf32>
    %13 = vector.shape_cast %12 : vector<1x1x256xf32> to vector<1x256xf32>
    %14 = vector.broadcast %13 : vector<1x256xf32> to vector<4x256xf32>
    %15 = arith.mulf %11, %14 : vector<4x256xf32>
    %c1_i32 = arith.constant 1 : i32
    %16 = tpu.dynamic_rotate %0 by %c1_i32 dim 1 : vector<4x256xf32>, i32 -> vector<4x256xf32>
    %c3 = arith.constant 3 : index
    %c0_8 = arith.constant 0 : index
    %c0_9 = arith.constant 0 : index
    %17 = vector.load %arg1[%c3, %c0_8, %c0_9] : memref<9x1x256xf32, #tpu.memory_space<vmem>>, vector<1x1x256xf32>
    %18 = vector.shape_cast %17 : vector<1x1x256xf32> to vector<1x256xf32>
    %19 = vector.broadcast %18 : vector<1x256xf32> to vector<4x256xf32>
    %20 = arith.mulf %16, %19 : vector<4x256xf32>
    %c255_i32 = arith.constant 255 : i32
    %21 = tpu.dynamic_rotate %0 by %c255_i32 dim 1 : vector<4x256xf32>, i32 -> vector<4x256xf32>
    %c5 = arith.constant 5 : index
    %c0_10 = arith.constant 0 : index
    %c0_11 = arith.constant 0 : index
    %22 = vector.load %arg1[%c5, %c0_10, %c0_11] : memref<9x1x256xf32, #tpu.memory_space<vmem>>, vector<1x1x256xf32>
    %23 = vector.shape_cast %22 : vector<1x1x256xf32> to vector<1x256xf32>
    %24 = vector.broadcast %23 : vector<1x256xf32> to vector<4x256xf32>
    %25 = arith.mulf %21, %24 : vector<4x256xf32>
    %c241_i32 = arith.constant 241 : i32
    %26 = tpu.dynamic_rotate %0 by %c241_i32 dim 1 : vector<4x256xf32>, i32 -> vector<4x256xf32>
    %c6 = arith.constant 6 : index
    %c0_12 = arith.constant 0 : index
    %c0_13 = arith.constant 0 : index
    %27 = vector.load %arg1[%c6, %c0_12, %c0_13] : memref<9x1x256xf32, #tpu.memory_space<vmem>>, vector<1x1x256xf32>
    %28 = vector.shape_cast %27 : vector<1x1x256xf32> to vector<1x256xf32>
    %29 = vector.broadcast %28 : vector<1x256xf32> to vector<4x256xf32>
    %30 = arith.mulf %26, %29 : vector<4x256xf32>
    %c240_i32 = arith.constant 240 : i32
    %31 = tpu.dynamic_rotate %0 by %c240_i32 dim 1 : vector<4x256xf32>, i32 -> vector<4x256xf32>
    %c7 = arith.constant 7 : index
    %c0_14 = arith.constant 0 : index
    %c0_15 = arith.constant 0 : index
    %32 = vector.load %arg1[%c7, %c0_14, %c0_15] : memref<9x1x256xf32, #tpu.memory_space<vmem>>, vector<1x1x256xf32>
    %33 = vector.shape_cast %32 : vector<1x1x256xf32> to vector<1x256xf32>
    %34 = vector.broadcast %33 : vector<1x256xf32> to vector<4x256xf32>
    %35 = arith.mulf %31, %34 : vector<4x256xf32>
    %c239_i32 = arith.constant 239 : i32
    %36 = tpu.dynamic_rotate %0 by %c239_i32 dim 1 : vector<4x256xf32>, i32 -> vector<4x256xf32>
    %c8 = arith.constant 8 : index
    %c0_16 = arith.constant 0 : index
    %c0_17 = arith.constant 0 : index
    %37 = vector.load %arg1[%c8, %c0_16, %c0_17] : memref<9x1x256xf32, #tpu.memory_space<vmem>>, vector<1x1x256xf32>
    %38 = vector.shape_cast %37 : vector<1x1x256xf32> to vector<1x256xf32>
    %39 = vector.broadcast %38 : vector<1x256xf32> to vector<4x256xf32>
    %40 = arith.mulf %36, %39 : vector<4x256xf32>
    %41 = tpu.concatenate %5, %10, %15, %20, %0, %25, %30, %35, %40 in 0 : vector<4x256xf32>, vector<4x256xf32>, vector<4x256xf32>, vector<4x256xf32>, vector<4x256xf32>, vector<4x256xf32>, vector<4x256xf32>, vector<4x256xf32>, vector<4x256xf32> -> vector<36x256xf32>
    %c0_18 = arith.constant 0 : index
    %c0_19 = arith.constant 0 : index
    %42 = vector.load %arg3[%c0_18, %c0_19] : memref<4x36xf32, #tpu.memory_space<vmem>>, vector<4x36xf32>
    %cst = arith.constant dense<0.000000e+00> : vector<4x256xf32>
    %43 = tpu.matmul %42, %41, %cst {dimension_numbers = #tpu.dot_dimension_numbers<[1], [0], [0], [1], [0, 0, 1, 1], [], []>} : vector<4x36xf32>, vector<36x256xf32>, vector<4x256xf32> -> vector<4x256xf32>
    %c0_20 = arith.constant 0 : index
    %c0_21 = arith.constant 0 : index
    %44 = vector.load %arg4[%c0_20, %c0_21] : memref<4x1xf32, #tpu.memory_space<vmem>>, vector<4x1xf32>
    %45 = vector.broadcast %44 : vector<4x1xf32> to vector<4x256xf32>
    %46 = arith.addf %43, %45 : vector<4x256xf32>
    %cst_22 = arith.constant 0.000000e+00 : f32
    %47 = vector.broadcast %cst_22 : f32 to vector<4x256xf32>
    %48 = arith.cmpf oge, %46, %47 : vector<4x256xf32>
    %cst_23 = arith.constant 1.000000e-01 : f32
    %49 = vector.broadcast %cst_23 : f32 to vector<4x256xf32>
    %50 = arith.mulf %49, %46 : vector<4x256xf32>
    %51 = arith.select %48, %46, %50 : vector<4x256xi1>, vector<4x256xf32>
    %c17_i32_24 = arith.constant 17 : i32
    %52 = tpu.dynamic_rotate %51 by %c17_i32_24 dim 1 : vector<4x256xf32>, i32 -> vector<4x256xf32>
    %c0_25 = arith.constant 0 : index
    %c0_26 = arith.constant 0 : index
    %c0_27 = arith.constant 0 : index
    %53 = vector.load %arg1[%c0_25, %c0_26, %c0_27] : memref<9x1x256xf32, #tpu.memory_space<vmem>>, vector<1x1x256xf32>
    %54 = vector.shape_cast %53 : vector<1x1x256xf32> to vector<1x256xf32>
    %55 = vector.broadcast %54 : vector<1x256xf32> to vector<4x256xf32>
    %56 = arith.mulf %52, %55 : vector<4x256xf32>
    %c16_i32_28 = arith.constant 16 : i32
    %57 = tpu.dynamic_rotate %51 by %c16_i32_28 dim 1 : vector<4x256xf32>, i32 -> vector<4x256xf32>
    %c1_29 = arith.constant 1 : index
    %c0_30 = arith.constant 0 : index
    %c0_31 = arith.constant 0 : index
    %58 = vector.load %arg1[%c1_29, %c0_30, %c0_31] : memref<9x1x256xf32, #tpu.memory_space<vmem>>, vector<1x1x256xf32>
    %59 = vector.shape_cast %58 : vector<1x1x256xf32> to vector<1x256xf32>
    %60 = vector.broadcast %59 : vector<1x256xf32> to vector<4x256xf32>
    %61 = arith.mulf %57, %60 : vector<4x256xf32>
    %c15_i32_32 = arith.constant 15 : i32
    %62 = tpu.dynamic_rotate %51 by %c15_i32_32 dim 1 : vector<4x256xf32>, i32 -> vector<4x256xf32>
    %c2_33 = arith.constant 2 : index
    %c0_34 = arith.constant 0 : index
    %c0_35 = arith.constant 0 : index
    %63 = vector.load %arg1[%c2_33, %c0_34, %c0_35] : memref<9x1x256xf32, #tpu.memory_space<vmem>>, vector<1x1x256xf32>
    %64 = vector.shape_cast %63 : vector<1x1x256xf32> to vector<1x256xf32>
    %65 = vector.broadcast %64 : vector<1x256xf32> to vector<4x256xf32>
    %66 = arith.mulf %62, %65 : vector<4x256xf32>
    %c1_i32_36 = arith.constant 1 : i32
    %67 = tpu.dynamic_rotate %51 by %c1_i32_36 dim 1 : vector<4x256xf32>, i32 -> vector<4x256xf32>
    %c3_37 = arith.constant 3 : index
    %c0_38 = arith.constant 0 : index
    %c0_39 = arith.constant 0 : index
    %68 = vector.load %arg1[%c3_37, %c0_38, %c0_39] : memref<9x1x256xf32, #tpu.memory_space<vmem>>, vector<1x1x256xf32>
    %69 = vector.shape_cast %68 : vector<1x1x256xf32> to vector<1x256xf32>
    %70 = vector.broadcast %69 : vector<1x256xf32> to vector<4x256xf32>
    %71 = arith.mulf %67, %70 : vector<4x256xf32>
    %c255_i32_40 = arith.constant 255 : i32
    %72 = tpu.dynamic_rotate %51 by %c255_i32_40 dim 1 : vector<4x256xf32>, i32 -> vector<4x256xf32>
    %c5_41 = arith.constant 5 : index
    %c0_42 = arith.constant 0 : index
    %c0_43 = arith.constant 0 : index
    %73 = vector.load %arg1[%c5_41, %c0_42, %c0_43] : memref<9x1x256xf32, #tpu.memory_space<vmem>>, vector<1x1x256xf32>
    %74 = vector.shape_cast %73 : vector<1x1x256xf32> to vector<1x256xf32>
    %75 = vector.broadcast %74 : vector<1x256xf32> to vector<4x256xf32>
    %76 = arith.mulf %72, %75 : vector<4x256xf32>
    %c241_i32_44 = arith.constant 241 : i32
    %77 = tpu.dynamic_rotate %51 by %c241_i32_44 dim 1 : vector<4x256xf32>, i32 -> vector<4x256xf32>
    %c6_45 = arith.constant 6 : index
    %c0_46 = arith.constant 0 : index
    %c0_47 = arith.constant 0 : index
    %78 = vector.load %arg1[%c6_45, %c0_46, %c0_47] : memref<9x1x256xf32, #tpu.memory_space<vmem>>, vector<1x1x256xf32>
    %79 = vector.shape_cast %78 : vector<1x1x256xf32> to vector<1x256xf32>
    %80 = vector.broadcast %79 : vector<1x256xf32> to vector<4x256xf32>
    %81 = arith.mulf %77, %80 : vector<4x256xf32>
    %c240_i32_48 = arith.constant 240 : i32
    %82 = tpu.dynamic_rotate %51 by %c240_i32_48 dim 1 : vector<4x256xf32>, i32 -> vector<4x256xf32>
    %c7_49 = arith.constant 7 : index
    %c0_50 = arith.constant 0 : index
    %c0_51 = arith.constant 0 : index
    %83 = vector.load %arg1[%c7_49, %c0_50, %c0_51] : memref<9x1x256xf32, #tpu.memory_space<vmem>>, vector<1x1x256xf32>
    %84 = vector.shape_cast %83 : vector<1x1x256xf32> to vector<1x256xf32>
    %85 = vector.broadcast %84 : vector<1x256xf32> to vector<4x256xf32>
    %86 = arith.mulf %82, %85 : vector<4x256xf32>
    %c239_i32_52 = arith.constant 239 : i32
    %87 = tpu.dynamic_rotate %51 by %c239_i32_52 dim 1 : vector<4x256xf32>, i32 -> vector<4x256xf32>
    %c8_53 = arith.constant 8 : index
    %c0_54 = arith.constant 0 : index
    %c0_55 = arith.constant 0 : index
    %88 = vector.load %arg1[%c8_53, %c0_54, %c0_55] : memref<9x1x256xf32, #tpu.memory_space<vmem>>, vector<1x1x256xf32>
    %89 = vector.shape_cast %88 : vector<1x1x256xf32> to vector<1x256xf32>
    %90 = vector.broadcast %89 : vector<1x256xf32> to vector<4x256xf32>
    %91 = arith.mulf %87, %90 : vector<4x256xf32>
    %92 = tpu.concatenate %56, %61, %66, %71, %51, %76, %81, %86, %91 in 0 : vector<4x256xf32>, vector<4x256xf32>, vector<4x256xf32>, vector<4x256xf32>, vector<4x256xf32>, vector<4x256xf32>, vector<4x256xf32>, vector<4x256xf32>, vector<4x256xf32> -> vector<36x256xf32>
    %c0_56 = arith.constant 0 : index
    %c0_57 = arith.constant 0 : index
    %93 = vector.load %arg5[%c0_56, %c0_57] : memref<8x36xf32, #tpu.memory_space<vmem>>, vector<8x36xf32>
    %cst_58 = arith.constant dense<0.000000e+00> : vector<8x256xf32>
    %94 = tpu.matmul %93, %92, %cst_58 {dimension_numbers = #tpu.dot_dimension_numbers<[1], [0], [0], [1], [0, 0, 1, 1], [], []>} : vector<8x36xf32>, vector<36x256xf32>, vector<8x256xf32> -> vector<8x256xf32>
    %c0_59 = arith.constant 0 : index
    %c0_60 = arith.constant 0 : index
    %95 = vector.load %arg6[%c0_59, %c0_60] : memref<8x1xf32, #tpu.memory_space<vmem>>, vector<8x1xf32>
    %96 = vector.broadcast %95 : vector<8x1xf32> to vector<8x256xf32>
    %97 = arith.addf %94, %96 : vector<8x256xf32>
    %cst_61 = arith.constant 0.000000e+00 : f32
    %98 = vector.broadcast %cst_61 : f32 to vector<8x256xf32>
    %99 = arith.cmpf oge, %97, %98 : vector<8x256xf32>
    %cst_62 = arith.constant 1.000000e-01 : f32
    %100 = vector.broadcast %cst_62 : f32 to vector<8x256xf32>
    %101 = arith.mulf %100, %97 : vector<8x256xf32>
    %102 = arith.select %99, %97, %101 : vector<8x256xi1>, vector<8x256xf32>
    %c17_i32_63 = arith.constant 17 : i32
    %103 = tpu.dynamic_rotate %102 by %c17_i32_63 dim 1 : vector<8x256xf32>, i32 -> vector<8x256xf32>
    %c0_64 = arith.constant 0 : index
    %c0_65 = arith.constant 0 : index
    %c0_66 = arith.constant 0 : index
    %104 = vector.load %arg1[%c0_64, %c0_65, %c0_66] : memref<9x1x256xf32, #tpu.memory_space<vmem>>, vector<1x1x256xf32>
    %105 = vector.shape_cast %104 : vector<1x1x256xf32> to vector<1x256xf32>
    %106 = vector.broadcast %105 : vector<1x256xf32> to vector<8x256xf32>
    %107 = arith.mulf %103, %106 : vector<8x256xf32>
    %c16_i32_67 = arith.constant 16 : i32
    %108 = tpu.dynamic_rotate %102 by %c16_i32_67 dim 1 : vector<8x256xf32>, i32 -> vector<8x256xf32>
    %c1_68 = arith.constant 1 : index
    %c0_69 = arith.constant 0 : index
    %c0_70 = arith.constant 0 : index
    %109 = vector.load %arg1[%c1_68, %c0_69, %c0_70] : memref<9x1x256xf32, #tpu.memory_space<vmem>>, vector<1x1x256xf32>
    %110 = vector.shape_cast %109 : vector<1x1x256xf32> to vector<1x256xf32>
    %111 = vector.broadcast %110 : vector<1x256xf32> to vector<8x256xf32>
    %112 = arith.mulf %108, %111 : vector<8x256xf32>
    %c15_i32_71 = arith.constant 15 : i32
    %113 = tpu.dynamic_rotate %102 by %c15_i32_71 dim 1 : vector<8x256xf32>, i32 -> vector<8x256xf32>
    %c2_72 = arith.constant 2 : index
    %c0_73 = arith.constant 0 : index
    %c0_74 = arith.constant 0 : index
    %114 = vector.load %arg1[%c2_72, %c0_73, %c0_74] : memref<9x1x256xf32, #tpu.memory_space<vmem>>, vector<1x1x256xf32>
    %115 = vector.shape_cast %114 : vector<1x1x256xf32> to vector<1x256xf32>
    %116 = vector.broadcast %115 : vector<1x256xf32> to vector<8x256xf32>
    %117 = arith.mulf %113, %116 : vector<8x256xf32>
    %c1_i32_75 = arith.constant 1 : i32
    %118 = tpu.dynamic_rotate %102 by %c1_i32_75 dim 1 : vector<8x256xf32>, i32 -> vector<8x256xf32>
    %c3_76 = arith.constant 3 : index
    %c0_77 = arith.constant 0 : index
    %c0_78 = arith.constant 0 : index
    %119 = vector.load %arg1[%c3_76, %c0_77, %c0_78] : memref<9x1x256xf32, #tpu.memory_space<vmem>>, vector<1x1x256xf32>
    %120 = vector.shape_cast %119 : vector<1x1x256xf32> to vector<1x256xf32>
    %121 = vector.broadcast %120 : vector<1x256xf32> to vector<8x256xf32>
    %122 = arith.mulf %118, %121 : vector<8x256xf32>
    %c255_i32_79 = arith.constant 255 : i32
    %123 = tpu.dynamic_rotate %102 by %c255_i32_79 dim 1 : vector<8x256xf32>, i32 -> vector<8x256xf32>
    %c5_80 = arith.constant 5 : index
    %c0_81 = arith.constant 0 : index
    %c0_82 = arith.constant 0 : index
    %124 = vector.load %arg1[%c5_80, %c0_81, %c0_82] : memref<9x1x256xf32, #tpu.memory_space<vmem>>, vector<1x1x256xf32>
    %125 = vector.shape_cast %124 : vector<1x1x256xf32> to vector<1x256xf32>
    %126 = vector.broadcast %125 : vector<1x256xf32> to vector<8x256xf32>
    %127 = arith.mulf %123, %126 : vector<8x256xf32>
    %c241_i32_83 = arith.constant 241 : i32
    %128 = tpu.dynamic_rotate %102 by %c241_i32_83 dim 1 : vector<8x256xf32>, i32 -> vector<8x256xf32>
    %c6_84 = arith.constant 6 : index
    %c0_85 = arith.constant 0 : index
    %c0_86 = arith.constant 0 : index
    %129 = vector.load %arg1[%c6_84, %c0_85, %c0_86] : memref<9x1x256xf32, #tpu.memory_space<vmem>>, vector<1x1x256xf32>
    %130 = vector.shape_cast %129 : vector<1x1x256xf32> to vector<1x256xf32>
    %131 = vector.broadcast %130 : vector<1x256xf32> to vector<8x256xf32>
    %132 = arith.mulf %128, %131 : vector<8x256xf32>
    %c240_i32_87 = arith.constant 240 : i32
    %133 = tpu.dynamic_rotate %102 by %c240_i32_87 dim 1 : vector<8x256xf32>, i32 -> vector<8x256xf32>
    %c7_88 = arith.constant 7 : index
    %c0_89 = arith.constant 0 : index
    %c0_90 = arith.constant 0 : index
    %134 = vector.load %arg1[%c7_88, %c0_89, %c0_90] : memref<9x1x256xf32, #tpu.memory_space<vmem>>, vector<1x1x256xf32>
    %135 = vector.shape_cast %134 : vector<1x1x256xf32> to vector<1x256xf32>
    %136 = vector.broadcast %135 : vector<1x256xf32> to vector<8x256xf32>
    %137 = arith.mulf %133, %136 : vector<8x256xf32>
    %c239_i32_91 = arith.constant 239 : i32
    %138 = tpu.dynamic_rotate %102 by %c239_i32_91 dim 1 : vector<8x256xf32>, i32 -> vector<8x256xf32>
    %c8_92 = arith.constant 8 : index
    %c0_93 = arith.constant 0 : index
    %c0_94 = arith.constant 0 : index
    %139 = vector.load %arg1[%c8_92, %c0_93, %c0_94] : memref<9x1x256xf32, #tpu.memory_space<vmem>>, vector<1x1x256xf32>
    %140 = vector.shape_cast %139 : vector<1x1x256xf32> to vector<1x256xf32>
    %141 = vector.broadcast %140 : vector<1x256xf32> to vector<8x256xf32>
    %142 = arith.mulf %138, %141 : vector<8x256xf32>
    %143 = tpu.concatenate %107, %112, %117, %122, %102, %127, %132, %137, %142 in 0 : vector<8x256xf32>, vector<8x256xf32>, vector<8x256xf32>, vector<8x256xf32>, vector<8x256xf32>, vector<8x256xf32>, vector<8x256xf32>, vector<8x256xf32>, vector<8x256xf32> -> vector<72x256xf32>
    %c0_95 = arith.constant 0 : index
    %c0_96 = arith.constant 0 : index
    %144 = vector.load %arg7[%c0_95, %c0_96] : memref<8x72xf32, #tpu.memory_space<vmem>>, vector<8x72xf32>
    %cst_97 = arith.constant dense<0.000000e+00> : vector<8x256xf32>
    %145 = tpu.matmul %144, %143, %cst_97 {dimension_numbers = #tpu.dot_dimension_numbers<[1], [0], [0], [1], [0, 0, 1, 1], [], []>} : vector<8x72xf32>, vector<72x256xf32>, vector<8x256xf32> -> vector<8x256xf32>
    %c0_98 = arith.constant 0 : index
    %c0_99 = arith.constant 0 : index
    %146 = vector.load %arg8[%c0_98, %c0_99] : memref<8x1xf32, #tpu.memory_space<vmem>>, vector<8x1xf32>
    %147 = vector.broadcast %146 : vector<8x1xf32> to vector<8x256xf32>
    %148 = arith.addf %145, %147 : vector<8x256xf32>
    %cst_100 = arith.constant 0.000000e+00 : f32
    %149 = vector.broadcast %cst_100 : f32 to vector<8x256xf32>
    %150 = arith.cmpf oge, %148, %149 : vector<8x256xf32>
    %cst_101 = arith.constant 1.000000e-01 : f32
    %151 = vector.broadcast %cst_101 : f32 to vector<8x256xf32>
    %152 = arith.mulf %151, %148 : vector<8x256xf32>
    %153 = arith.select %150, %148, %152 : vector<8x256xi1>, vector<8x256xf32>
    %c0_102 = arith.constant 0 : index
    %c0_103 = arith.constant 0 : index
    %154 = vector.load %arg9[%c0_102, %c0_103] : memref<8x256xf32, #tpu.memory_space<vmem>>, vector<8x256xf32>
    tpu.vector_store %arg9[%c0_102, %c0_103], %153 {strides = array<i32>} : memref<8x256xf32, #tpu.memory_space<vmem>>, vector<8x256xf32>,
    return
  }
  func.func @transform_0(%arg0: i32) -> (i32, i32, i32) {
    %c0_i32 = arith.constant 0 : i32
    %c0_i32_0 = arith.constant 0 : i32
    %c0_i32_1 = arith.constant 0 : i32
    %c0_i32_2 = arith.constant 0 : i32
    return %c0_i32, %c0_i32_0, %c0_i32_1 : i32, i32, i32
  }
  func.func @transform_1(%arg0: i32) -> (i32, i32) {
    %c0_i32 = arith.constant 0 : i32
    %c0_i32_0 = arith.constant 0 : i32
    return %c0_i32, %arg0 : i32, i32
  }
  func.func @transform_2(%arg0: i32) -> (i32, i32) {
    %c0_i32 = arith.constant 0 : i32
    %c0_i32_0 = arith.constant 0 : i32
    %c0_i32_1 = arith.constant 0 : i32
    return %c0_i32, %c0_i32_0 : i32, i32
  }
  func.func @transform_3(%arg0: i32) -> (i32, i32) {
    %c0_i32 = arith.constant 0 : i32
    %c0_i32_0 = arith.constant 0 : i32
    %c0_i32_1 = arith.constant 0 : i32
    return %c0_i32, %c0_i32_0 : i32, i32
  }
  func.func @transform_4(%arg0: i32) -> (i32, i32) {
    %c0_i32 = arith.constant 0 : i32
    %c0_i32_0 = arith.constant 0 : i32
    %c0_i32_1 = arith.constant 0 : i32
    return %c0_i32, %c0_i32_0 : i32, i32
  }
  func.func @transform_5(%arg0: i32) -> (i32, i32) {
    %c0_i32 = arith.constant 0 : i32
    %c0_i32_0 = arith.constant 0 : i32
    %c0_i32_1 = arith.constant 0 : i32
    return %c0_i32, %c0_i32_0 : i32, i32
  }
  func.func @transform_6(%arg0: i32) -> (i32, i32) {
    %c0_i32 = arith.constant 0 : i32
    %c0_i32_0 = arith.constant 0 : i32
    %c0_i32_1 = arith.constant 0 : i32
    return %c0_i32, %c0_i32_0 : i32, i32
  }
  func.func @transform_7(%arg0: i32) -> (i32, i32) {
    %c0_i32 = arith.constant 0 : i32
    %c0_i32_0 = arith.constant 0 : i32
    %c0_i32_1 = arith.constant 0 : i32
    return %c0_i32, %c0_i32_0 : i32, i32
  }
  func.func @transform_8(%arg0: i32) -> (i32, i32) {
    %c0_i32 = arith.constant 0 : i32
    %c0_i32_0 = arith.constant 0 : i32
    return %c0_i32, %arg0 : i32, i32
  }
}

</mosaic_0001>

<llo_original>
// kernel: translator_forward.1
$region0: #{translator_forward.1}
  #allocation0 [shape = 'u32[]', space=smem, size = 0x4, offset = 0x4, fixed_abs, tag = 'smem constant byte address 0x4 - core index']
  #allocation1 [shape = 'u32[144,128]{1,0:T(1,128)}', space=vmem, size = 0x12000, scoped, tag = 'internal scratch']
  %s0 = inlined_call_operand.vmem [shape: f32[9,1,256], index: 0, kind: input, shape index: {}]
  %s1 = inlined_call_operand.vmem [shape: f32[4,512], index: 1, kind: input, shape index: {}]
  %s2 = inlined_call_operand.vmem [shape: f32[4,36], index: 2, kind: input, shape index: {}]
  %s3 = inlined_call_operand.vmem [shape: f32[4,1], index: 3, kind: input, shape index: {}]
  %s4 = inlined_call_operand.vmem [shape: f32[8,36], index: 4, kind: input, shape index: {}]
  %s5 = inlined_call_operand.vmem [shape: f32[8,1], index: 5, kind: input, shape index: {}]
  %s6 = inlined_call_operand.vmem [shape: f32[8,72], index: 6, kind: input, shape index: {}]
  %s7 = inlined_call_operand.vmem [shape: f32[8,1], index: 7, kind: input, shape index: {}]
  %s8 = inlined_call_operand.vmem [shape: f32[8,512], index: 8, kind: output, shape index: {}]
  %s9 = sld [smem:[#allocation0]]
  $region65: #{translator_forward.1} parent=0
    _
  %s11 = ssub.s32 1, %s9
  %s12 = scalar_select 0, %s11, %s9
  loop: start=0, step=1, limit=4
  $region2: #{translator_forward.1} parent=0 // loop_pre_header
    _
  $region3: #{translator_forward.1} parent=0 // loop_header
    %s14 = sphi 0, %s18
    %p15 = scmp.ge.s32.totalorder %s14, 4
    %s22 = sphi 0, %s22
    %s24 = sphi 0, %s22
    %s25 = sphi 0, %s24
    %s39 = sphi 0, %s25
    %s45 = sphi 0, %s47
    %s48 = sphi 0, %s45
    %s49 = sphi 0, %s48
    %s65 = sphi 0, %s49
    %s69 = sphi 0, %s69
    %s71 = sphi 0, %s69
    %s72 = sphi 0, %s71
    %s86 = sphi 0, %s72
    %s90 = sphi 0, %s90
    %s92 = sphi 0, %s90
    %s93 = sphi 0, %s92
    %s107 = sphi 0, %s93
    %s111 = sphi 0, %s111
    %s113 = sphi 0, %s111
    %s114 = sphi 0, %s113
    %s128 = sphi 0, %s114
    %s132 = sphi 0, %s132
    %s134 = sphi 0, %s132
    %s135 = sphi 0, %s134
    %s149 = sphi 0, %s135
    %s153 = sphi 0, %s153
    %s155 = sphi 0, %s153
    %s156 = sphi 0, %s155
    %s170 = sphi 0, %s156
    %s174 = sphi 0, %s174
    %s176 = sphi 0, %s174
    %s177 = sphi 0, %s176
    %s191 = sphi 0, %s177
    %s197 = sphi 0, %s199
    %s200 = sphi 0, %s197
    %s201 = sphi 0, %s200
    %s217 = sphi 0, %s201
  $region4: #{translator_forward.1} parent=0 // loop_header_branch
    %17 = sbr.rel (%p15) target = $region8
  $region5: #{translator_forward.1} parent=0 // loop_body
    %s19 = ssub.s32 %s14, 1
    %s20 = ssub.s32 %s14, 2
    %s21 = sadd.s32 %s14, 1
    %s23 = sadd.s32 %s22, 1
    %p26 = scmp.eq.s32.totalorder %s14, 1
    %p27 = scmp.ne.s32.totalorder %s22, %s24
    %p28 = scmp.eq.s32.totalorder %s14, 0
    %p29 = por %p27, %p28
    %p30 = scmp.ne.s32.totalorder %s22, %s24
    %p31 = scmp.eq.s32.totalorder %s19, 1
    %p32 = por %p30, %p31
    %p33 = scmp.ne.s32.totalorder %s24, %s25
    %p34 = scmp.eq.s32.totalorder %s19, 0
    %p35 = por %p33, %p34
    %p36 = scmp.ne.s32.totalorder %s24, %s25
    %p37 = scmp.eq.s32.totalorder %s20, 1
    %p38 = por %p36, %p37
    %p40 = scmp.ne.s32.totalorder %s25, %s39
    %p41 = scmp.eq.s32.totalorder %s20, 0
    %p42 = por %p40, %p41
    %s43 = ssub.s32 %s14, %s21
    %p44 = scmp.eq.s32.totalorder %s43, 0
    %s46 = sadd.s32 %s45, 1
    %s47 = scalar_select %p44, %s45, %s46
    %p50 = pneg %p44
    %p51 = scmp.eq.s32.totalorder %s14, 1
    %p52 = por %p50, %p51
    %p53 = scmp.ne.s32.totalorder %s45, %s48
    %p54 = scmp.eq.s32.totalorder %s14, 0
    %p55 = por %p53, %p54
    %p56 = scmp.ne.s32.totalorder %s45, %s48
    %p57 = scmp.eq.s32.totalorder %s19, 1
    %p58 = por %p56, %p57
    %p59 = scmp.ne.s32.totalorder %s48, %s49
    %p60 = scmp.eq.s32.totalorder %s19, 0
    %p61 = por %p59, %p60
    %p62 = scmp.ne.s32.totalorder %s48, %s49
    %p63 = scmp.eq.s32.totalorder %s20, 1
    %p64 = por %p62, %p63
    %p66 = scmp.ne.s32.totalorder %s49, %s65
    %p67 = scmp.eq.s32.totalorder %s20, 0
    %p68 = por %p66, %p67
    %s70 = sadd.s32 %s69, 1
    %p73 = scmp.eq.s32.totalorder %s14, 1
    %p74 = scmp.ne.s32.totalorder %s69, %s71
    %p75 = scmp.eq.s32.totalorder %s14, 0
    %p76 = por %p74, %p75
    %p77 = scmp.ne.s32.totalorder %s69, %s71
    %p78 = scmp.eq.s32.totalorder %s19, 1
    %p79 = por %p77, %p78
    %p80 = scmp.ne.s32.totalorder %s71, %s72
    %p81 = scmp.eq.s32.totalorder %s19, 0
    %p82 = por %p80, %p81
    %p83 = scmp.ne.s32.totalorder %s71, %s72
    %p84 = scmp.eq.s32.totalorder %s20, 1
    %p85 = por %p83, %p84
    %p87 = scmp.ne.s32.totalorder %s72, %s86
    %p88 = scmp.eq.s32.totalorder %s20, 0
    %p89 = por %p87, %p88
    %s91 = sadd.s32 %s90, 1
    %p94 = scmp.eq.s32.totalorder %s14, 1
    %p95 = scmp.ne.s32.totalorder %s90, %s92
    %p96 = scmp.eq.s32.totalorder %s14, 0
    %p97 = por %p95, %p96
    %p98 = scmp.ne.s32.totalorder %s90, %s92
    %p99 = scmp.eq.s32.totalorder %s19, 1
    %p100 = por %p98, %p99
    %p101 = scmp.ne.s32.totalorder %s92, %s93
    %p102 = scmp.eq.s32.totalorder %s19, 0
    %p103 = por %p101, %p102
    %p104 = scmp.ne.s32.totalorder %s92, %s93
    %p105 = scmp.eq.s32.totalorder %s20, 1
    %p106 = por %p104, %p105
    %p108 = scmp.ne.s32.totalorder %s93, %s107
    %p109 = scmp.eq.s32.totalorder %s20, 0
    %p110 = por %p108, %p109
    %s112 = sadd.s32 %s111, 1
    %p115 = scmp.eq.s32.totalorder %s14, 1
    %p116 = scmp.ne.s32.totalorder %s111, %s113
    %p117 = scmp.eq.s32.totalorder %s14, 0
    %p118 = por %p116, %p117
    %p119 = scmp.ne.s32.totalorder %s111, %s113
    %p120 = scmp.eq.s32.totalorder %s19, 1
    %p121 = por %p119, %p120
    %p122 = scmp.ne.s32.totalorder %s113, %s114
    %p123 = scmp.eq.s32.totalorder %s19, 0
    %p124 = por %p122, %p123
    %p125 = scmp.ne.s32.totalorder %s113, %s114
    %p126 = scmp.eq.s32.totalorder %s20, 1
    %p127 = por %p125, %p126
    %p129 = scmp.ne.s32.totalorder %s114, %s128
    %p130 = scmp.eq.s32.totalorder %s20, 0
    %p131 = por %p129, %p130
    %s133 = sadd.s32 %s132, 1
    %p136 = scmp.eq.s32.totalorder %s14, 1
    %p137 = scmp.ne.s32.totalorder %s132, %s134
    %p138 = scmp.eq.s32.totalorder %s14, 0
    %p139 = por %p137, %p138
    %p140 = scmp.ne.s32.totalorder %s132, %s134
    %p141 = scmp.eq.s32.totalorder %s19, 1
    %p142 = por %p140, %p141
    %p143 = scmp.ne.s32.totalorder %s134, %s135
    %p144 = scmp.eq.s32.totalorder %s19, 0
    %p145 = por %p143, %p144
    %p146 = scmp.ne.s32.totalorder %s134, %s135
    %p147 = scmp.eq.s32.totalorder %s20, 1
    %p148 = por %p146, %p147
    %p150 = scmp.ne.s32.totalorder %s135, %s149
    %p151 = scmp.eq.s32.totalorder %s20, 0
    %p152 = por %p150, %p151
    %s154 = sadd.s32 %s153, 1
    %p157 = scmp.eq.s32.totalorder %s14, 1
    %p158 = scmp.ne.s32.totalorder %s153, %s155
    %p159 = scmp.eq.s32.totalorder %s14, 0
    %p160 = por %p158, %p159
    %p161 = scmp.ne.s32.totalorder %s153, %s155
    %p162 = scmp.eq.s32.totalorder %s19, 1
    %p163 = por %p161, %p162
    %p164 = scmp.ne.s32.totalorder %s155, %s156
    %p165 = scmp.eq.s32.totalorder %s19, 0
    %p166 = por %p164, %p165
    %p167 = scmp.ne.s32.totalorder %s155, %s156
    %p168 = scmp.eq.s32.totalorder %s20, 1
    %p169 = por %p167, %p168
    %p171 = scmp.ne.s32.totalorder %s156, %s170
    %p172 = scmp.eq.s32.totalorder %s20, 0
    %p173 = por %p171, %p172
    %s175 = sadd.s32 %s174, 1
    %p178 = scmp.eq.s32.totalorder %s14, 1
    %p179 = scmp.ne.s32.totalorder %s174, %s176
    %p180 = scmp.eq.s32.totalorder %s14, 0
    %p181 = por %p179, %p180
    %p182 = scmp.ne.s32.totalorder %s174, %s176
    %p183 = scmp.eq.s32.totalorder %s19, 1
    %p184 = por %p182, %p183
    %p185 = scmp.ne.s32.totalorder %s176, %s177
    %p186 = scmp.eq.s32.totalorder %s19, 0
    %p187 = por %p185, %p186
    %p188 = scmp.ne.s32.totalorder %s176, %s177
    %p189 = scmp.eq.s32.totalorder %s20, 1
    %p190 = por %p188, %p189
    %p192 = scmp.ne.s32.totalorder %s177, %s191
    %p193 = scmp.eq.s32.totalorder %s20, 0
    %p194 = por %p192, %p193
    %s195 = ssub.s32 %s14, %s21
    %p196 = scmp.eq.s32.totalorder %s195, 0
    %s198 = sadd.s32 %s197, 1
    %s199 = scalar_select %p196, %s197, %s198
    %p202 = pneg %p196
    %p203 = scmp.eq.s32.totalorder %s14, 1
    %p204 = por %p202, %p203
    %p205 = scmp.ne.s32.totalorder %s197, %s200
    %p206 = scmp.eq.s32.totalorder %s14, 0
    %p207 = por %p205, %p206
    %p208 = scmp.ne.s32.totalorder %s197, %s200
    %p209 = scmp.eq.s32.totalorder %s19, 1
    %p210 = por %p208, %p209
    %p211 = scmp.ne.s32.totalorder %s200, %s201
    %p212 = scmp.eq.s32.totalorder %s19, 0
    %p213 = por %p211, %p212
    %p214 = scmp.ne.s32.totalorder %s200, %s201
    %p215 = scmp.eq.s32.totalorder %s20, 1
    %p216 = por %p214, %p215
    %p218 = scmp.ne.s32.totalorder %s201, %s217
    %p219 = scmp.eq.s32.totalorder %s20, 0
    %p220 = por %p218, %p219
    %p221 = scmp.le.s32.totalorder 1, %s14
    %p222 = scmp.lt.s32.totalorder %s14, 3
    %p223 = pnand %p221, %p222
    %p224 = pneg %p223
    // Predicated region
    $region9: #{translator_forward.1} parent=5 // pred_check
      _
    $region10: #{translator_forward.1} parent=5 // pred_check_branch
      %226 = sbr.rel (%p223) target = $region12
    $region11: #{translator_forward.1} parent=5 // pred_region
      %s227 = ssub.s32 %s14, 1
      // Predicated region
      $region13: #{translator_forward.1} parent=11 // pred_check
        %p228 = pneg %p35
      $region14: #{translator_forward.1} parent=11 // pred_check_branch
        %230 = sbr.rel (%p228) target = $region16
      $region15: #{translator_forward.1} parent=11 // pred_region
        _
      $region16: #{translator_forward.1} parent=11 // pred_fallthru
        _
      // Predicated region
      $region17: #{translator_forward.1} parent=11 // pred_check
        %p231 = pneg %p82
      $region18: #{translator_forward.1} parent=11 // pred_check_branch
        %233 = sbr.rel (%p231) target = $region20
      $region19: #{translator_forward.1} parent=11 // pred_region
        _
      $region20: #{translator_forward.1} parent=11 // pred_fallthru
        _
      // Predicated region
      $region21: #{translator_forward.1} parent=11 // pred_check
        %p234 = pneg %p103
      $region22: #{translator_forward.1} parent=11 // pred_check_branch
        %236 = sbr.rel (%p234) target = $region24
      $region23: #{translator_forward.1} parent=11 // pred_region
        _
      $region24: #{translator_forward.1} parent=11 // pred_fallthru
        _
      // Predicated region
      $region25: #{translator_forward.1} parent=11 // pred_check
        %p237 = pneg %p124
      $region26: #{translator_forward.1} parent=11 // pred_check_branch
        %239 = sbr.rel (%p237) target = $region28
      $region27: #{translator_forward.1} parent=11 // pred_region
        _
      $region28: #{translator_forward.1} parent=11 // pred_fallthru
        _
      // Predicated region
      $region29: #{translator_forward.1} parent=11 // pred_check
        %p240 = pneg %p145
      $region30: #{translator_forward.1} parent=11 // pred_check_branch
        %242 = sbr.rel (%p240) target = $region32
      $region31: #{translator_forward.1} parent=11 // pred_region
        _
      $region32: #{translator_forward.1} parent=11 // pred_fallthru
        _
      // Predicated region
      $region33: #{translator_forward.1} parent=11 // pred_check
        %p243 = pneg %p166
      $region34: #{translator_forward.1} parent=11 // pred_check_branch
        %245 = sbr.rel (%p243) target = $region36
      $region35: #{translator_forward.1} parent=11 // pred_region
        _
      $region36: #{translator_forward.1} parent=11 // pred_fallthru
        _
      // Predicated region
      $region37: #{translator_forward.1} parent=11 // pred_check
        %p246 = pneg %p187
      $region38: #{translator_forward.1} parent=11 // pred_check_branch
        %248 = sbr.rel (%p246) target = $region40
      $region39: #{translator_forward.1} parent=11 // pred_region
        _
      $region40: #{translator_forward.1} parent=11 // pred_fallthru
        _
    $region12: #{translator_forward.1} parent=5 // pred_fallthru
      _
    %p249 = scmp.lt.s32.totalorder %s14, 2
    // Predicated region
    $region41: #{translator_forward.1} parent=5 // pred_check
      %p250 = pneg %p249
    $region42: #{translator_forward.1} parent=5 // pred_check_branch
      %252 = sbr.rel (%p250) target = $region44
    $region43: #{translator_forward.1} parent=5 // pred_region
      // Predicated region
      $region45: #{translator_forward.1} parent=43 // pred_check
        %p253 = pneg %p55
      $region46: #{translator_forward.1} parent=43 // pred_check_branch
        %255 = sbr.rel (%p253) target = $region48
      $region47: #{translator_forward.1} parent=43 // pred_region
        %s256 = smul.u32 2, %s14
        %p257 = scmp.lt.s32.totalorder %s256, 3
        %s258 = scalar_select %p257, %s256, 3
        %s259 = smul.addr %s258, 4
        %s260 = scalar_lea.vmem %s1, %s259
        %s261 = smul.u32 2, %s14
      $region48: #{translator_forward.1} parent=43 // pred_fallthru
        _
    $region44: #{translator_forward.1} parent=5 // pred_fallthru
      _
    %p262 = scmp.le.s32.totalorder 1, %s14
    %p263 = scmp.lt.s32.totalorder %s14, 3
    %p264 = pnand %p262, %p263
    %p265 = pneg %p264
    // Predicated region
    $region49: #{translator_forward.1} parent=5 // pred_check
      _
    $region50: #{translator_forward.1} parent=5 // pred_check_branch
      %267 = sbr.rel (%p264) target = $region52
    $region51: #{translator_forward.1} parent=5 // pred_region
      %s268 = ssub.s32 %s14, 1
      %p269 = pneg %p35
      %p270 = pneg %p32
      %s271 = smul.u32 2, %s19
      %p272 = scmp.lt.s32.totalorder %s271, 3
      %s273 = scalar_select %p272, %s271, 3
      %s274 = smul.addr %s273, 4
      %s275 = scalar_lea.vmem %s1, %s274
      %p276 = pneg %p61
      %p277 = pneg %p58
      %p278 = pneg %p82
      %p279 = pneg %p79
      %p280 = pneg %p103
      %p281 = pneg %p100
      %p282 = pneg %p124
      %p283 = pneg %p121
      %p284 = pneg %p145
      %p285 = pneg %p142
      %p286 = pneg %p166
      %p287 = pneg %p163
      %p288 = pneg %p187
      %p289 = pneg %p184
      %p290 = pneg %p213
      %p291 = pneg %p210
      %s292 = smul.u32 2, %s19
      %p293 = scmp.lt.s32.totalorder %s292, 3
      %s294 = scalar_select %p293, %s292, 3
      %s295 = smul.addr %s294, 8
      %s296 = scalar_lea.vmem %s8, %s295
      %s297 = smul.u32 2, %s19
      %p298 = scmp.lt.s32.totalorder %s297, 3
      %s299 = scalar_select %p298, %s297, 3
      %s300 = smul.addr %s299, 4
      %s301 = scalar_lea.vmem %s1, %s300
      %s302 = smul.u32 2, %s19
      %s303 = smul.u32 2, %s19
      %p304 = scmp.lt.s32.totalorder %s303, 3
      %s305 = scalar_select %p304, %s303, 3
      %s306 = smul.addr %s305, 8
      %s307 = scalar_lea.vmem %s8, %s306
      %s308 = smul.u32 2, %s19
      %v309 = vld [vmem:[%s301] sm:$0xff]
      %v311 = vcombine.high %v309, %v309
      %313 = vrot.lane.b32.xlu0 %v309, 17
      %v314 = vpop.permute.xlu0 %313
      %315 = vrot.lane.b32.xlu0 %v311, 17
      %v316 = vpop.permute.xlu0 %315
      %v317 = vlaneseq
      %v318 = vand.u32 %v317, 127
      %vm319 = vcmp.lt.s32.totalorder %v318, 17
      %v320 = vsel %vm319, %v314, %v316
      %v321 = vsel %vm319, %v316, %v314
      %v322 = vld [vmem:[%s0] sm:$0x3]
      %v324 = vlaneseq
      %v325 = vshrl.u32 %v324, 7
      %v326 = vsub.s32 0, %v325
      %v327 = vrot.slane %v322, %v326
      %v328 = vlaneseq
      %v329 = vshrl.u32 %v328, 7
      %v330 = vsub.s32 1, %v329
      %v331 = vrot.slane %v322, %v330
      %v334 = vmul.f32 %v321, %v327
      %v335 = vmul.f32 %v320, %v331
      %336 = vrot.lane.b32.xlu0 %v309, 16
      %v337 = vpop.permute.xlu0 %336
      %338 = vrot.lane.b32.xlu0 %v311, 16
      %v339 = vpop.permute.xlu0 %338
      %vm340 = vcmp.lt.s32.totalorder %v318, 16
      %v341 = vsel %vm340, %v337, %v339
      %v342 = vsel %vm340, %v339, %v337
      %s343 = scalar_lea.vmem %s0, 2
      %v344 = vld [vmem:[%s343] sm:$0x3]
      %v346 = vlaneseq
      %v347 = vshrl.u32 %v346, 7
      %v348 = vsub.s32 0, %v347
      %v349 = vrot.slane %v344, %v348
      %v350 = vlaneseq
      %v351 = vshrl.u32 %v350, 7
      %v352 = vsub.s32 1, %v351
      %v353 = vrot.slane %v344, %v352
      %v356 = vmul.f32 %v342, %v349
      %v357 = vmul.f32 %v341, %v353
      %358 = vrot.lane.b32.xlu0 %v309, 15
      %v359 = vpop.permute.xlu0 %358
      %360 = vrot.lane.b32.xlu0 %v311, 15
      %v361 = vpop.permute.xlu0 %360
      %vm362 = vcmp.lt.s32.totalorder %v318, 15
      %v363 = vsel %vm362, %v359, %v361
      %v364 = vsel %vm362, %v361, %v359
      %s365 = scalar_lea.vmem %s0, 4
      %v366 = vld [vmem:[%s365] sm:$0x3]
      %v368 = vlaneseq
      %v369 = vshrl.u32 %v368, 7
      %v370 = vsub.s32 0, %v369
      %v371 = vrot.slane %v366, %v370
      %v372 = vlaneseq
      %v373 = vshrl.u32 %v372, 7
      %v374 = vsub.s32 1, %v373
      %v375 = vrot.slane %v366, %v374
      %v378 = vmul.f32 %v364, %v371
      %v379 = vmul.f32 %v363, %v375
      %380 = vrot.lane.b32.xlu0 %v309, 1
      %v381 = vpop.permute.xlu0 %380
      %382 = vrot.lane.b32.xlu0 %v311, 1
      %v383 = vpop.permute.xlu0 %382
      %vm384 = vcmp.lt.s32.totalorder %v318, 1
      %v385 = vsel %vm384, %v381, %v383
      %v386 = vsel %vm384, %v383, %v381
      %s387 = scalar_lea.vmem %s0, 6
      %v388 = vld [vmem:[%s387] sm:$0x3]
      %v390 = vlaneseq
      %v391 = vshrl.u32 %v390, 7
      %v392 = vsub.s32 0, %v391
      %v393 = vrot.slane %v388, %v392
      %v394 = vlaneseq
      %v395 = vshrl.u32 %v394, 7
      %v396 = vsub.s32 1, %v395
      %v397 = vrot.slane %v388, %v396
      %v400 = vmul.f32 %v386, %v393
      %v401 = vmul.f32 %v385, %v397
      %402 = vrot.lane.b32.xlu0 %v309, 127
      %v403 = vpop.permute.xlu0 %402
      %404 = vrot.lane.b32.xlu0 %v311, 127
      %v405 = vpop.permute.xlu0 %404
      %vm406 = vcmp.lt.s32.totalorder %v318, 127
      %v407 = vsel %vm406, %v403, %v405
      %v408 = vsel %vm406, %v405, %v403
      %s409 = scalar_lea.vmem %s0, 10
      %v410 = vld [vmem:[%s409] sm:$0x3]
      %v412 = vlaneseq
      %v413 = vshrl.u32 %v412, 7
      %v414 = vsub.s32 0, %v413
      %v415 = vrot.slane %v410, %v414
      %v416 = vlaneseq
      %v417 = vshrl.u32 %v416, 7
      %v418 = vsub.s32 1, %v417
      %v419 = vrot.slane %v410, %v418
      %v422 = vmul.f32 %v407, %v415
      %v423 = vmul.f32 %v408, %v419
      %424 = vrot.lane.b32.xlu0 %v309, 113
      %v425 = vpop.permute.xlu0 %424
      %426 = vrot.lane.b32.xlu0 %v311, 113
      %v427 = vpop.permute.xlu0 %426
      %vm428 = vcmp.lt.s32.totalorder %v318, 113
      %v429 = vsel %vm428, %v425, %v427
      %v430 = vsel %vm428, %v427, %v425
      %s431 = scalar_lea.vmem %s0, 12
      %v432 = vld [vmem:[%s431] sm:$0x3]
      %v434 = vlaneseq
      %v435 = vshrl.u32 %v434, 7
      %v436 = vsub.s32 0, %v435
      %v437 = vrot.slane %v432, %v436
      %v438 = vlaneseq
      %v439 = vshrl.u32 %v438, 7
      %v440 = vsub.s32 1, %v439
      %v441 = vrot.slane %v432, %v440
      %v444 = vmul.f32 %v429, %v437
      %v445 = vmul.f32 %v430, %v441
      %446 = vrot.lane.b32.xlu0 %v309, 112
      %v447 = vpop.permute.xlu0 %446
      %448 = vrot.lane.b32.xlu0 %v311, 112
      %v449 = vpop.permute.xlu0 %448
      %vm450 = vcmp.lt.s32.totalorder %v318, 112
      %v451 = vsel %vm450, %v447, %v449
      %v452 = vsel %vm450, %v449, %v447
      %s453 = scalar_lea.vmem %s0, 14
      %v454 = vld [vmem:[%s453] sm:$0x3]
      %v456 = vlaneseq
      %v457 = vshrl.u32 %v456, 7
      %v458 = vsub.s32 0, %v457
      %v459 = vrot.slane %v454, %v458
      %v460 = vlaneseq
      %v461 = vshrl.u32 %v460, 7
      %v462 = vsub.s32 1, %v461
      %v463 = vrot.slane %v454, %v462
      %v466 = vmul.f32 %v451, %v459
      %v467 = vmul.f32 %v452, %v463
      %468 = vrot.lane.b32.xlu0 %v309, 111
      %v469 = vpop.permute.xlu0 %468
      %470 = vrot.lane.b32.xlu0 %v311, 111
      %v471 = vpop.permute.xlu0 %470
      %vm472 = vcmp.lt.s32.totalorder %v318, 111
      %v473 = vsel %vm472, %v469, %v471
      %v474 = vsel %vm472, %v471, %v469
      %s475 = scalar_lea.vmem %s0, 16
      %v476 = vld [vmem:[%s475] sm:$0x3]
      %v478 = vlaneseq
      %v479 = vshrl.u32 %v478, 7
      %v480 = vsub.s32 0, %v479
      %v481 = vrot.slane %v476, %v480
      %v482 = vlaneseq
      %v483 = vshrl.u32 %v482, 7
      %v484 = vsub.s32 1, %v483
      %v485 = vrot.slane %v476, %v484
      %v488 = vmul.f32 %v473, %v481
      %v489 = vmul.f32 %v474, %v485
      %v492 = vrot.slane %v356, 4
      %v493 = vrot.slane %v357, 4
      %v498 = vrot.slane %v400, 4
      %v499 = vrot.slane %v401, 4
      %v504 = vrot.slane %v422, 4
      %v505 = vrot.slane %v423, 4
      %v510 = vrot.slane %v466, 4
      %v511 = vrot.slane %v467, 4
      %vm514 = vcmask 1043456
      %v515 = vsel %vm514, %v334, %v492
      %v516 = vsel %vm514, %v335, %v493
      %v517 = vsel %vm514, %v378, %v498
      %v518 = vsel %vm514, %v379, %v499
      %v519 = vsel %vm514, %v309, %v504
      %v520 = vsel %vm514, %v311, %v505
      %v521 = vsel %vm514, %v444, %v510
      %v522 = vsel %vm514, %v445, %v511
      %v523 = vld [vmem:[%s2] sm:$0xf]
      %v524 = vld [vmem:[%s3] sm:$0xf]
      %526 = vset.pattern.permute.xlu0 0
      %527 = vperm.xlu0 %526, %v524
      %v528 = vpop.permute.xlu0 %527
      %vm530 = vcmask 293888
      %v532 = vsel %vm530, %v523, 0
      %v535 = vsel %vm514, %v488, 0
      %v538 = vsel %vm514, %v489, 0
      %540 = vmatprep.subr.mxu0 %v516
      %541 = vmatpush1.msra.mxu0 %v515
      %542 = vmatprep.subr.mxu0 %v518
      %543 = vmatpush1.msra.mxu0 %v517
      %544 = vmatprep.subr.mxu0 %v520
      %545 = vmatpush1.msra.mxu0 %v519
      %546 = vmatprep.subr.mxu0 %v522
      %547 = vmatpush1.msra.mxu0 %v521
      %548 = vmatprep.subr.mxu0 %v538
      %549 = vmatpush1.msra.mxu0 %v535
      %550 = vmatprep.subr.mxu0 0.0
      %551 = vmatpush1.msra.mxu0 0.0
      %552 = vmatprep.subr.mxu0 0.0
      %553 = vmatpush1.msra.mxu0 0.0
      %554 = vmatprep.subr.mxu0 0.0
      %555 = vmatpush1.msra.mxu0 0.0
      %556 = vmatprep.subr.mxu0 0.0
      %557 = vmatpush1.msra.mxu0 0.0
      %558 = vmatprep.subr.mxu0 0.0
      %559 = vmatpush1.msra.mxu0 0.0
      %560 = vmatprep.subr.mxu0 0.0
      %561 = vmatpush1.msra.mxu0 0.0
      %562 = vmatprep.subr.mxu0 0.0
      %563 = vmatpush1.msra.mxu0 0.0
      %564 = vmatprep.subr.mxu0 0.0
      %565 = vmatpush1.msra.mxu0 0.0
      %566 = vmatprep.subr.mxu0 0.0
      %567 = vmatpush1.msra.mxu0 0.0
      %568 = vmatprep.subr.mxu0 0.0
      %569 = vmatpush1.msra.mxu0 0.0
      %570 = vmatprep.subr.mxu0 0.0
      %571 = vmatpush1.msra.mxu0 0.0
      %572 = vmatprep.subr.mxu0 0.0
      %573 = vmatpush1.msra.mxu0 0.0
      %574 = vmatprep.subr.mxu0 0.0
      %575 = vmatpush1.msra.mxu0 0.0
      %576 = vmatprep.subr.mxu0 0.0
      %577 = vmatpush1.msra.mxu0 0.0
      %578 = vmatprep.subr.mxu0 0.0
      %579 = vmatpush1.msra.mxu0 0.0
      %580 = vmatprep.subr.mxu0 0.0
      %581 = vmatpush1.msra.mxu0 0.0
      %582 = vmatprep.subr.mxu0 0.0
      %583 = vmatpush1.msra.mxu0 0.0
      %584 = vmatprep.subr.mxu0 0.0
      %585 = vmatpush1.msra.mxu0 0.0
      %586 = vmatprep.subr.mxu0 0.0
      %587 = vmatpush1.msra.mxu0 0.0
      %588 = vmatprep.subr.mxu0 0.0
      %589 = vmatpush1.msra.mxu0 0.0
      %590 = vmatprep.subr.mxu0 0.0
      %591 = vmatpush1.msra.mxu0 0.0
      %592 = vmatprep.subr.mxu0 0.0
      %593 = vmatpush1.msra.mxu0 0.0
      %594 = vmatprep.subr.mxu0 0.0
      %595 = vmatpush1.msra.mxu0 0.0
      %596 = vmatprep.subr.mxu0 0.0
      %597 = vmatpush1.msra.mxu0 0.0
      %598 = vmatprep.subr.mxu0 0.0
      %599 = vmatpush1.msra.mxu0 0.0
      %600 = vmatprep.subr.mxu0 0.0
      %601 = vmatpush1.msra.mxu0 0.0
      %602 = vmatprep.subr.mxu0 0.0
      %603 = vmatpush1.msra.mxu0 0.0
      %604 = vmatprep.mubr.f32.mxu0 0.0
      %605 = vmatmul.mubr.f32.gmra.mrb[0].mxu0 %v532
      %v606 = vpop.f32.mrb[0].mxu0
      %v607 = vadd.f32 %v528, %v606
      %v608 = vpop.f32.mrb[0].mxu0
      %v609 = vadd.f32 %v528, %v608
      %610 = vdwg.mxu0
      %vm611 = vcmp.ge.f32.partialorder %v607, 0.0
      %vm612 = vcmp.ge.f32.partialorder %v609, 0.0
      %v613 = vmul.f32 %v607, 0.1
      %v614 = vmul.f32 %v609, 0.1
      %v615 = vsel %vm611, %v607, %v613
      %v616 = vsel %vm612, %v609, %v614
      %617 = vrot.lane.b32.xlu0 %v615, 17
      %v618 = vpop.permute.xlu0 %617
      %619 = vrot.lane.b32.xlu0 %v616, 17
      %v620 = vpop.permute.xlu0 %619
      %v621 = vsel %vm319, %v618, %v620
      %v622 = vsel %vm319, %v620, %v618
      %v623 = vmul.f32 %v622, %v327
      %v624 = vmul.f32 %v621, %v331
      %625 = vrot.lane.b32.xlu0 %v615, 16
      %v626 = vpop.permute.xlu0 %625
      %627 = vrot.lane.b32.xlu0 %v616, 16
      %v628 = vpop.permute.xlu0 %627
      %v629 = vsel %vm340, %v626, %v628
      %v630 = vsel %vm340, %v628, %v626
      %v631 = vmul.f32 %v630, %v349
      %v632 = vmul.f32 %v629, %v353
      %633 = vrot.lane.b32.xlu0 %v615, 15
      %v634 = vpop.permute.xlu0 %633
      %635 = vrot.lane.b32.xlu0 %v616, 15
      %v636 = vpop.permute.xlu0 %635
      %v637 = vsel %vm362, %v634, %v636
      %v638 = vsel %vm362, %v636, %v634
      %v639 = vmul.f32 %v638, %v371
      %v640 = vmul.f32 %v637, %v375
      %641 = vrot.lane.b32.xlu0 %v615, 1
      %v642 = vpop.permute.xlu0 %641
      %643 = vrot.lane.b32.xlu0 %v616, 1
      %v644 = vpop.permute.xlu0 %643
      %v645 = vsel %vm384, %v642, %v644
      %v646 = vsel %vm384, %v644, %v642
      %v647 = vmul.f32 %v646, %v393
      %v648 = vmul.f32 %v645, %v397
      %649 = vrot.lane.b32.xlu0 %v615, 127
      %v650 = vpop.permute.xlu0 %649
      %651 = vrot.lane.b32.xlu0 %v616, 127
      %v652 = vpop.permute.xlu0 %651
      %v653 = vsel %vm406, %v650, %v652
      %v654 = vsel %vm406, %v652, %v650
      %v655 = vmul.f32 %v653, %v415
      %v656 = vmul.f32 %v654, %v419
      %657 = vrot.lane.b32.xlu0 %v615, 113
      %v658 = vpop.permute.xlu0 %657
      %659 = vrot.lane.b32.xlu0 %v616, 113
      %v660 = vpop.permute.xlu0 %659
      %v661 = vsel %vm428, %v658, %v660
      %v662 = vsel %vm428, %v660, %v658
      %v663 = vmul.f32 %v661, %v437
      %v664 = vmul.f32 %v662, %v441
      %665 = vrot.lane.b32.xlu0 %v615, 112
      %v666 = vpop.permute.xlu0 %665
      %667 = vrot.lane.b32.xlu0 %v616, 112
      %v668 = vpop.permute.xlu0 %667
      %v669 = vsel %vm450, %v666, %v668
      %v670 = vsel %vm450, %v668, %v666
      %v671 = vmul.f32 %v669, %v459
      %v672 = vmul.f32 %v670, %v463
      %673 = vrot.lane.b32.xlu0 %v615, 111
      %v674 = vpop.permute.xlu0 %673
      %675 = vrot.lane.b32.xlu0 %v616, 111
      %v676 = vpop.permute.xlu0 %675
      %v677 = vsel %vm472, %v674, %v676
      %v678 = vsel %vm472, %v676, %v674
      %v679 = vmul.f32 %v677, %v481
      %v680 = vmul.f32 %v678, %v485
      %v683 = vrot.slane %v631, 4
      %v684 = vrot.slane %v632, 4
      %v689 = vrot.slane %v647, 4
      %v690 = vrot.slane %v648, 4
      %v695 = vrot.slane %v655, 4
      %v696 = vrot.slane %v656, 4
      %v701 = vrot.slane %v671, 4
      %v702 = vrot.slane %v672, 4
      %v705 = vsel %vm514, %v623, %v683
      %v706 = vsel %vm514, %v624, %v684
      %v707 = vsel %vm514, %v639, %v689
      %v708 = vsel %vm514, %v640, %v690
      %v709 = vsel %vm514, %v615, %v695
      %v710 = vsel %vm514, %v616, %v696
      %v711 = vsel %vm514, %v663, %v701
      %v712 = vsel %vm514, %v664, %v702
      %v713 = vld [vmem:[%s4] sm:$0xff]
      %v714 = vld [vmem:[%s5] sm:$0xff]
      %716 = vset.pattern.permute.xlu0 0
      %717 = vperm.xlu0 %716, %v714
      %v718 = vpop.permute.xlu0 %717
      %v721 = vsel %vm530, %v713, 0
      %v724 = vsel %vm514, %v679, 0
      %v727 = vsel %vm514, %v680, 0
      %729 = vmatprep.subr.mxu0 %v706
      %730 = vmatpush1.msra.mxu0 %v705
      %731 = vmatprep.subr.mxu0 %v708
      %732 = vmatpush1.msra.mxu0 %v707
      %733 = vmatprep.subr.mxu0 %v710
      %734 = vmatpush1.msra.mxu0 %v709
      %735 = vmatprep.subr.mxu0 %v712
      %736 = vmatpush1.msra.mxu0 %v711
      %737 = vmatprep.subr.mxu0 %v727
      %738 = vmatpush1.msra.mxu0 %v724
      %739 = vmatprep.subr.mxu0 0.0
      %740 = vmatpush1.msra.mxu0 0.0
      %741 = vmatprep.subr.mxu0 0.0
      %742 = vmatpush1.msra.mxu0 0.0
      %743 = vmatprep.subr.mxu0 0.0
      %744 = vmatpush1.msra.mxu0 0.0
      %745 = vmatprep.subr.mxu0 0.0
      %746 = vmatpush1.msra.mxu0 0.0
      %747 = vmatprep.subr.mxu0 0.0
      %748 = vmatpush1.msra.mxu0 0.0
      %749 = vmatprep.subr.mxu0 0.0
      %750 = vmatpush1.msra.mxu0 0.0
      %751 = vmatprep.subr.mxu0 0.0
      %752 = vmatpush1.msra.mxu0 0.0
      %753 = vmatprep.subr.mxu0 0.0
      %754 = vmatpush1.msra.mxu0 0.0
      %755 = vmatprep.subr.mxu0 0.0
      %756 = vmatpush1.msra.mxu0 0.0
      %757 = vmatprep.subr.mxu0 0.0
      %758 = vmatpush1.msra.mxu0 0.0
      %759 = vmatprep.subr.mxu0 0.0
      %760 = vmatpush1.msra.mxu0 0.0
      %761 = vmatprep.subr.mxu0 0.0
      %762 = vmatpush1.msra.mxu0 0.0
      %763 = vmatprep.subr.mxu0 0.0
      %764 = vmatpush1.msra.mxu0 0.0
      %765 = vmatprep.subr.mxu0 0.0
      %766 = vmatpush1.msra.mxu0 0.0
      %767 = vmatprep.subr.mxu0 0.0
      %768 = vmatpush1.msra.mxu0 0.0
      %769 = vmatprep.subr.mxu0 0.0
      %770 = vmatpush1.msra.mxu0 0.0
      %771 = vmatprep.subr.mxu0 0.0
      %772 = vmatpush1.msra.mxu0 0.0
      %773 = vmatprep.subr.mxu0 0.0
      %774 = vmatpush1.msra.mxu0 0.0
      %775 = vmatprep.subr.mxu0 0.0
      %776 = vmatpush1.msra.mxu0 0.0
      %777 = vmatprep.subr.mxu0 0.0
      %778 = vmatpush1.msra.mxu0 0.0
      %779 = vmatprep.subr.mxu0 0.0
      %780 = vmatpush1.msra.mxu0 0.0
      %781 = vmatprep.subr.mxu0 0.0
      %782 = vmatpush1.msra.mxu0 0.0
      %783 = vmatprep.subr.mxu0 0.0
      %784 = vmatpush1.msra.mxu0 0.0
      %785 = vmatprep.subr.mxu0 0.0
      %786 = vmatpush1.msra.mxu0 0.0
      %787 = vmatprep.subr.mxu0 0.0
      %788 = vmatpush1.msra.mxu0 0.0
      %789 = vmatprep.subr.mxu0 0.0
      %790 = vmatpush1.msra.mxu0 0.0
      %791 = vmatprep.subr.mxu0 0.0
      %792 = vmatpush1.msra.mxu0 0.0
      %793 = vmatprep.mubr.f32.mxu0 0.0
      %794 = vmatmul.mubr.f32.gmra.mrb[0].mxu0 %v721
      %v795 = vpop.f32.mrb[0].mxu0
      %v796 = vadd.f32 %v718, %v795
      %v797 = vpop.f32.mrb[0].mxu0
      %v798 = vadd.f32 %v718, %v797
      %799 = vdwg.mxu0
      %vm800 = vcmp.ge.f32.partialorder %v796, 0.0
      %vm801 = vcmp.ge.f32.partialorder %v798, 0.0
      %v802 = vmul.f32 %v796, 0.1
      %v803 = vmul.f32 %v798, 0.1
      %v804 = vsel %vm800, %v796, %v802
      %v805 = vsel %vm801, %v798, %v803
      %806 = vrot.lane.b32.xlu0 %v804, 17
      %v807 = vpop.permute.xlu0 %806
      %808 = vrot.lane.b32.xlu0 %v805, 17
      %v809 = vpop.permute.xlu0 %808
      %v810 = vsel %vm319, %v807, %v809
      %v811 = vsel %vm319, %v809, %v807
      %v812 = vmul.f32 %v811, %v327
      %v813 = vmul.f32 %v810, %v331
      %814 = vrot.lane.b32.xlu0 %v804, 16
      %v815 = vpop.permute.xlu0 %814
      %816 = vrot.lane.b32.xlu0 %v805, 16
      %v817 = vpop.permute.xlu0 %816
      %v818 = vsel %vm340, %v815, %v817
      %v819 = vsel %vm340, %v817, %v815
      %v820 = vmul.f32 %v819, %v349
      %v821 = vmul.f32 %v818, %v353
      %822 = vrot.lane.b32.xlu0 %v804, 15
      %v823 = vpop.permute.xlu0 %822
      %824 = vrot.lane.b32.xlu0 %v805, 15
      %v825 = vpop.permute.xlu0 %824
      %v826 = vsel %vm362, %v823, %v825
      %v827 = vsel %vm362, %v825, %v823
      %v828 = vmul.f32 %v827, %v371
      %v829 = vmul.f32 %v826, %v375
      %830 = vrot.lane.b32.xlu0 %v804, 1
      %v831 = vpop.permute.xlu0 %830
      %832 = vrot.lane.b32.xlu0 %v805, 1
      %v833 = vpop.permute.xlu0 %832
      %v834 = vsel %vm384, %v831, %v833
      %v835 = vsel %vm384, %v833, %v831
      %v836 = vmul.f32 %v835, %v393
      %v837 = vmul.f32 %v834, %v397
      %838 = vrot.lane.b32.xlu0 %v804, 127
      %v839 = vpop.permute.xlu0 %838
      %840 = vrot.lane.b32.xlu0 %v805, 127
      %v841 = vpop.permute.xlu0 %840
      %v842 = vsel %vm406, %v839, %v841
      %v843 = vsel %vm406, %v841, %v839
      %v844 = vmul.f32 %v842, %v415
      %v845 = vmul.f32 %v843, %v419
      %846 = vrot.lane.b32.xlu0 %v804, 113
      %v847 = vpop.permute.xlu0 %846
      %848 = vrot.lane.b32.xlu0 %v805, 113
      %v849 = vpop.permute.xlu0 %848
      %v850 = vsel %vm428, %v847, %v849
      %v851 = vsel %vm428, %v849, %v847
      %v852 = vmul.f32 %v850, %v437
      %v853 = vmul.f32 %v851, %v441
      %854 = vrot.lane.b32.xlu0 %v804, 112
      %v855 = vpop.permute.xlu0 %854
      %856 = vrot.lane.b32.xlu0 %v805, 112
      %v857 = vpop.permute.xlu0 %856
      %v858 = vsel %vm450, %v855, %v857
      %v859 = vsel %vm450, %v857, %v855
      %v860 = vmul.f32 %v858, %v459
      %v861 = vmul.f32 %v859, %v463
      %862 = vrot.lane.b32.xlu0 %v804, 111
      %v863 = vpop.permute.xlu0 %862
      %864 = vrot.lane.b32.xlu0 %v805, 111
      %v865 = vpop.permute.xlu0 %864
      %v866 = vsel %vm472, %v863, %v865
      %v867 = vsel %vm472, %v865, %v863
      %v868 = vmul.f32 %v866, %v481
      %v869 = vmul.f32 %v867, %v485
      %v870 = vld [vmem:[%s6] sm:$0xff]
      %v871 = vld [vmem:[%s7] sm:$0xff]
      %873 = vset.pattern.permute.xlu0 0
      %874 = vperm.xlu0 %873, %v871
      %v875 = vpop.permute.xlu0 %874
      %vm877 = vcmask 588800
      %v879 = vsel %vm877, %v870, 0
      %881 = vmatprep.subr.mxu0 %v813
      %882 = vmatpush1.msra.mxu0 %v812
      %883 = vmatprep.subr.mxu0 %v821
      %884 = vmatpush1.msra.mxu0 %v820
      %885 = vmatprep.subr.mxu0 %v829
      %886 = vmatpush1.msra.mxu0 %v828
      %887 = vmatprep.subr.mxu0 %v837
      %888 = vmatpush1.msra.mxu0 %v836
      %889 = vmatprep.subr.mxu0 %v805
      %890 = vmatpush1.msra.mxu0 %v804
      %891 = vmatprep.subr.mxu0 %v845
      %892 = vmatpush1.msra.mxu0 %v844
      %893 = vmatprep.subr.mxu0 %v853
      %894 = vmatpush1.msra.mxu0 %v852
      %895 = vmatprep.subr.mxu0 %v861
      %896 = vmatpush1.msra.mxu0 %v860
      %897 = vmatprep.subr.mxu0 %v869
      %898 = vmatpush1.msra.mxu0 %v868
      %899 = vmatprep.subr.mxu0 0.0
      %900 = vmatpush1.msra.mxu0 0.0
      %901 = vmatprep.subr.mxu0 0.0
      %902 = vmatpush1.msra.mxu0 0.0
      %903 = vmatprep.subr.mxu0 0.0
      %904 = vmatpush1.msra.mxu0 0.0
      %905 = vmatprep.subr.mxu0 0.0
      %906 = vmatpush1.msra.mxu0 0.0
      %907 = vmatprep.subr.mxu0 0.0
      %908 = vmatpush1.msra.mxu0 0.0
      %909 = vmatprep.subr.mxu0 0.0
      %910 = vmatpush1.msra.mxu0 0.0
      %911 = vmatprep.subr.mxu0 0.0
      %912 = vmatpush1.msra.mxu0 0.0
      %913 = vmatprep.subr.mxu0 0.0
      %914 = vmatpush1.msra.mxu0 0.0
      %915 = vmatprep.subr.mxu0 0.0
      %916 = vmatpush1.msra.mxu0 0.0
      %917 = vmatprep.subr.mxu0 0.0
      %918 = vmatpush1.msra.mxu0 0.0
      %919 = vmatprep.subr.mxu0 0.0
      %920 = vmatpush1.msra.mxu0 0.0
      %921 = vmatprep.subr.mxu0 0.0
      %922 = vmatpush1.msra.mxu0 0.0
      %923 = vmatprep.subr.mxu0 0.0
      %924 = vmatpush1.msra.mxu0 0.0
      %925 = vmatprep.subr.mxu0 0.0
      %926 = vmatpush1.msra.mxu0 0.0
      %927 = vmatprep.subr.mxu0 0.0
      %928 = vmatpush1.msra.mxu0 0.0
      %929 = vmatprep.subr.mxu0 0.0
      %930 = vmatpush1.msra.mxu0 0.0
      %931 = vmatprep.subr.mxu0 0.0
      %932 = vmatpush1.msra.mxu0 0.0
      %933 = vmatprep.subr.mxu0 0.0
      %934 = vmatpush1.msra.mxu0 0.0
      %935 = vmatprep.subr.mxu0 0.0
      %936 = vmatpush1.msra.mxu0 0.0
      %937 = vmatprep.subr.mxu0 0.0
      %938 = vmatpush1.msra.mxu0 0.0
      %939 = vmatprep.subr.mxu0 0.0
      %940 = vmatpush1.msra.mxu0 0.0
      %941 = vmatprep.subr.mxu0 0.0
      %942 = vmatpush1.msra.mxu0 0.0
      %943 = vmatprep.subr.mxu0 0.0
      %944 = vmatpush1.msra.mxu0 0.0
      %945 = vmatprep.mubr.f32.mxu0 0.0
      %946 = vmatmul.mubr.f32.gmra.mrb[0].mxu0 %v879
      %v947 = vpop.f32.mrb[0].mxu0
      %v948 = vadd.f32 %v875, %v947
      %v949 = vpop.f32.mrb[0].mxu0
      %v950 = vadd.f32 %v875, %v949
      %951 = vdwg.mxu0
      %vm952 = vcmp.ge.f32.partialorder %v948, 0.0
      %vm953 = vcmp.ge.f32.partialorder %v950, 0.0
      %v954 = vmul.f32 %v948, 0.1
      %v955 = vmul.f32 %v950, 0.1
      %v956 = vsel %vm952, %v948, %v954
      %v957 = vsel %vm953, %v950, %v955
      %958 = vst [vmem:[%s307] sm:$0xff] %v956
      %959 = vst [vmem:[%s307 + $0x8] sm:$0xff] %v957
      %s960 = smul.u32 2, %s19
      %p961 = scmp.lt.s32.totalorder %s960, 3
      %s962 = scalar_select %p961, %s960, 3
      %s963 = smul.addr %s962, 8
      %s964 = scalar_lea.vmem %s8, %s963
      // Predicated region
      $region53: #{translator_forward.1} parent=51 // pred_check
        %p965 = pneg %p210
      $region54: #{translator_forward.1} parent=51 // pred_check_branch
        %967 = sbr.rel (%p965) target = $region56
      $region55: #{translator_forward.1} parent=51 // pred_region
        %s968 = smul.u32 2, %s19
      $region56: #{translator_forward.1} parent=51 // pred_fallthru
        _
    $region52: #{translator_forward.1} parent=5 // pred_fallthru
      _
    %p969 = scmp.le.s32.totalorder 2, %s14
    // Predicated region
    $region57: #{translator_forward.1} parent=5 // pred_check
      %p970 = pneg %p969
    $region58: #{translator_forward.1} parent=5 // pred_check_branch
      %972 = sbr.rel (%p970) target = $region60
    $region59: #{translator_forward.1} parent=5 // pred_region
      %s973 = ssub.s32 %s14, 2
      // Predicated region
      $region61: #{translator_forward.1} parent=59 // pred_check
        %p974 = pneg %p216
      $region62: #{translator_forward.1} parent=59 // pred_check_branch
        %976 = sbr.rel (%p974) target = $region64
      $region63: #{translator_forward.1} parent=59 // pred_region
        %s977 = smul.u32 2, %s20
        %p978 = scmp.lt.s32.totalorder %s977, 3
        %s979 = scalar_select %p978, %s977, 3
        %s980 = smul.addr %s979, 8
        %s981 = scalar_lea.vmem %s8, %s980
      $region64: #{translator_forward.1} parent=59 // pred_fallthru
        _
    $region60: #{translator_forward.1} parent=5 // pred_fallthru
      _
  $region6: #{translator_forward.1} parent=0 // loop_footer
    %s18 = sadd.s32 1, %s14
  $region7: #{translator_forward.1} parent=0 // loop_footer_branch
    %13 = sbr.rel target = $region3
  $region8: #{translator_forward.1} parent=0 // loop_exit
    _

</llo_original>
